<compile_context>
chip_gen: v6e
topology: v6e:2x2x1
jax: 0.10.0
libtpu: 0.0.40
codegen_flags: <defaults>
</compile_context>

<pallas_src>
import jax
import jax.numpy as jnp
from jax import lax
from jax.experimental import pallas as pl
from jax.experimental.pallas import tpu as pltpu


def dwconv_relu_kernel(x_ref, w_ref, b_ref, o_ref):
    # x_ref: (1, TC, H, W) VMEM input block   (W on lanes, H on sublanes)
    # w_ref: (C * 9,)      SMEM f32, per-channel 3x3 taps in (ky, kx) order
    # b_ref: (C,)          SMEM f32 bias
    # o_ref: (1, TC, H, W) VMEM output block
    _, tc, H, W = x_ref.shape
    c0 = pl.program_id(1) * tc          # global channel base of this block

    # ---- hoisted, channel-invariant constants (kept outside the loop) ----
    use_col_roll = (W % 128 == 0)
    if use_col_roll:
        col = lax.broadcasted_iota(jnp.int32, (H, W), 1)
        not_first_col = col >= 1
        not_last_col = col <= W - 2
    else:
        zcol = jnp.zeros((H, 1), jnp.float32)
    zrow = jnp.zeros((1, W), jnp.float32)

    def shift_cols(x, d):
        # out[:, j] = x[:, j - d] with zero fill at the image border (d = +/-1).
        if use_col_roll:
            # XLU lane rotate + VALU select; no materialized concatenate copy.
            rolled = pltpu.roll(x, d, axis=1)
            mask = not_first_col if d > 0 else not_last_col
            return jnp.where(mask, rolled, 0.0)
        # Fallback for W not a multiple of 128 (e.g. the small test shapes).
        if d > 0:
            return jnp.concatenate([zcol, x[:, : W - 1]], axis=1)
        return jnp.concatenate([x[:, 1:], zcol], axis=1)

    def shift_rows(r, d):
        # out[y, :] = r[y - d, :] with zero fill (d = +/-1).
        # TODO(synk): a sublane pltpu.roll + mask would move this to the XLU as
        # well; kept as a concatenate since the roll lowering for arbitrary H is
        # not guaranteed and each shifted value is consumed exactly once.
        if d > 0:
            return jnp.concatenate([zrow, r[: H - 1]], axis=0)
        return jnp.concatenate([r[1:], zrow], axis=0)

    def per_channel(c, carry):
        # One (H, W) plane per channel: f32 temporaries are bounded by the
        # plane size, independent of how many channels the DMA block carries.
        x = x_ref[0, c].astype(jnp.float32)                  # (H, W)
        xl = shift_cols(x, 1)                                # x[:, j-1]
        xr = shift_cols(x, -1)                               # x[:, j+1]

        wb = (c0 + c) * 9
        w = [w_ref[wb + k] for k in range(9)]                # 9 scalar taps (SMEM)

        # Horizontal (kx) sums for the three filter rows; reuse xl / x / xr.
        r0 = xl * w[0] + x * w[1] + xr * w[2]
        r1 = xl * w[3] + x * w[4] + xr * w[5]
        r2 = xl * w[6] + x * w[7] + xr * w[8]

        # Vertical (ky) alignment; bias + ReLU fused into the store.
        acc = r1 + shift_rows(r0, 1) + shift_rows(r2, -1)
        o_ref[0, c] = jnp.maximum(acc + b_ref[c0 + c], 0.0).astype(o_ref.dtype)
        return carry

    lax.fori_loop(0, tc, per_channel, 0)


def _round_up(v, m):
    return (v + m - 1) // m * m


def _pick_tiling(N, C, H, W, itemsize):
    """Channel-tile / VMEM-limit choice: generation aware, never exceeds budget."""
    try:
        vmem_cap = int(pltpu.get_tpu_info().vmem_capacity_bytes)
    except Exception:
        vmem_cap = 64 * 1024 * 1024          # conservative fallback: v7x physical VMEM
    vmem_limit = min(int(vmem_cap * 0.75), 100 * 1024 * 1024)

    plane = _round_up(H, 8) * _round_up(W, 128)   # padded (sublane, lane) plane
    temps = 8 * plane * 4                         # per-channel f32 temporaries (tc-independent)
    per_c = plane * itemsize * 4                  # in + out blocks, double buffered
    budget = int(vmem_limit * 0.8)
    # TODO(synk): if a single channel plane ever exceeds the budget (very large
    # H*W), an H grid axis with halo handling would be needed; not implemented.
    max_tc = max((budget - temps) // per_c, 1)

    tc = 1
    for d in range(1, C + 1):
        if C % d == 0 and d <= max_tc:
            tc = d
    # Enough grid steps for DMA/compute overlap and for 2-TC parts to split work.
    while tc > 1 and N * (C // tc) < 8:
        tc = max(d for d in range(1, tc) if C % d == 0)

    scratch = min(max(temps, 1 << 20), max(int(vmem_limit * 0.2), 1 << 20))
    return tc, vmem_limit, scratch


def dwconv_relu(x_nchw, weight_oihw, bias):
    """DWConv.forward: depthwise 3x3 conv (stride=1, pad=1, groups=C) + bias + ReLU.

    x_nchw:      (N, C, H, W)   PyTorch NCHW layout, kept end-to-end (no transposes)
    weight_oihw: (C, 1, 3, 3)   PyTorch depthwise conv weight layout
    bias:        (C,)
    returns:     (N, C, H, W)
    """
    N, C, H, W = x_nchw.shape
    w_flat = weight_oihw.astype(jnp.float32).reshape(C * 9)   # (c, ky, kx) row-major
    b = bias.astype(jnp.float32)

    tc, vmem_limit, scratch = _pick_tiling(N, C, H, W, x_nchw.dtype.itemsize)
    grid = (N, C // tc)

    # TODO(synk): only stride=1 (the module's default) is implemented.
    # TODO(synk): for W < 128 the lane axis (and the output stores) are only
    # partially dense; a layout folding W*C (or H*W) onto lanes would be needed
    # for full lane utilization on tiny spatial sizes.
    return pl.pallas_call(
        dwconv_relu_kernel,
        out_shape=jax.ShapeDtypeStruct((N, C, H, W), x_nchw.dtype),
        grid=grid,
        in_specs=[
            # (1, tc, H, W) blocks are fully contiguous in HBM -> large DMA bursts.
            pl.BlockSpec((1, tc, H, W), lambda n, c: (n, c, 0, 0)),
            # Per-channel scalar taps / bias live in SMEM (scalar load + splat).
            pl.BlockSpec(memory_space=pltpu.MemorySpace.SMEM),
            pl.BlockSpec(memory_space=pltpu.MemorySpace.SMEM),
        ],
        out_specs=pl.BlockSpec((1, tc, H, W), lambda n, c: (n, c, 0, 0)),
        compiler_params=pltpu.CompilerParams(
            # Disjoint output tiles on both axes -> fully parallel (lets 2-TC
            # parts split the grid; harmless on single-TC chips).
            dimension_semantics=("parallel", "parallel"),
            vmem_limit_bytes=vmem_limit,
            internal_scratch_in_bytes=scratch,
        ),
    )(x_nchw, w_flat, b)


if __name__ == "__main__":
    key = jax.random.PRNGKey(0)
    kx, kw, kb = jax.random.split(key, 3)

    N, C, H, W = 2, 4, 16, 16
    x = jax.random.normal(kx, (N, C, H, W), dtype=jnp.float32)
    weight = jax.random.normal(kw, (C, 1, 3, 3), dtype=jnp.float32) * 0.1
    bias = jax.random.normal(kb, (C,), dtype=jnp.float32) * 0.1

    out = jax.block_until_ready(dwconv_relu(x, weight, bias))

    # Reference check against lax depthwise conv + bias + ReLU.
    ref = lax.conv_general_dilated(
        x, weight, window_strides=(1, 1), padding=((1, 1), (1, 1)),
        dimension_numbers=("NCHW", "OIHW", "NCHW"), feature_group_count=C)
    ref = jnp.maximum(ref + bias.reshape(1, C, 1, 1), 0.0)
    assert jnp.allclose(out, ref, atol=1e-5, rtol=1e-5), "mismatch vs reference"

    print("KERNEL_OK")
</pallas_src>

<mosaic_0001>
module attributes {stable_mosaic.version = 11 : i64} {
  func.func @dwconv_relu_kernel(%arg0: i32, %arg1: i32, %arg2: memref<1x1x16x16xf32, #tpu.memory_space<vmem>>, %arg3: memref<36xf32, #tpu.memory_space<smem>>, %arg4: memref<4xf32, #tpu.memory_space<smem>>, %arg5: memref<1x1x16x16xf32, #tpu.memory_space<vmem>>) attributes {dimension_semantics = [#tpu.dimension_semantics<parallel>, #tpu.dimension_semantics<parallel>], iteration_bounds = array<i64: 2, 4>, scalar_prefetch = 0 : i64, scratch_operands = 0 : i64, tpu.core_type = #tpu.core_type<tc>, window_params = [{transform_indices = @transform_0, window_bounds = array<i64: 1, 1, 16, 16>}, {transform_indices = @transform_1, window_bounds = array<i64: 36>}, {transform_indices = @transform_2, window_bounds = array<i64: 4>}, {transform_indices = @transform_3, window_bounds = array<i64: 1, 1, 16, 16>}]} {
    %c1_i32 = arith.constant 1 : i32
    %0 = arith.muli %arg1, %c1_i32 : i32
    %cst = arith.constant 0.000000e+00 : f32
    %1 = vector.broadcast %cst : f32 to vector<16x1xf32>
    %cst_0 = arith.constant 0.000000e+00 : f32
    %2 = vector.broadcast %cst_0 : f32 to vector<1x16xf32>
    %c0_i32 = arith.constant 0 : i32
    %c0 = arith.constant 0 : index
    %3 = arith.index_cast %c0_i32 : i32 to index
    %c0_1 = arith.constant 0 : index
    %c0_2 = arith.constant 0 : index
    %4 = vector.load %arg2[%c0, %3, %c0_1, %c0_2] : memref<1x1x16x16xf32, #tpu.memory_space<vmem>>, vector<1x1x16x16xf32>
    %5 = vector.shape_cast %4 : vector<1x1x16x16xf32> to vector<16x16xf32>
    %6 = vector.extract_strided_slice %5 {offsets = [0, 0], sizes = [16, 15], strides = [1, 1]} : vector<16x16xf32> to vector<16x15xf32>
    %7 = tpu.concatenate %1, %6 in 1 : vector<16x1xf32>, vector<16x15xf32> -> vector<16x16xf32>
    %8 = vector.extract_strided_slice %5 {offsets = [0, 1], sizes = [16, 15], strides = [1, 1]} : vector<16x16xf32> to vector<16x15xf32>
    %9 = tpu.concatenate %8, %1 in 1 : vector<16x15xf32>, vector<16x1xf32> -> vector<16x16xf32>
    %10 = arith.addi %0, %c0_i32 : i32
    %c9_i32 = arith.constant 9 : i32
    %11 = arith.muli %10, %c9_i32 : i32
    %c0_i32_3 = arith.constant 0 : i32
    %12 = arith.addi %11, %c0_i32_3 : i32
    %13 = arith.index_cast %12 : i32 to index
    %14 = memref.load %arg3[%13] : memref<36xf32, #tpu.memory_space<smem>>
    %c1_i32_4 = arith.constant 1 : i32
    %15 = arith.addi %11, %c1_i32_4 : i32
    %16 = arith.index_cast %15 : i32 to index
    %17 = memref.load %arg3[%16] : memref<36xf32, #tpu.memory_space<smem>>
    %c2_i32 = arith.constant 2 : i32
    %18 = arith.addi %11, %c2_i32 : i32
    %19 = arith.index_cast %18 : i32 to index
    %20 = memref.load %arg3[%19] : memref<36xf32, #tpu.memory_space<smem>>
    %c3_i32 = arith.constant 3 : i32
    %21 = arith.addi %11, %c3_i32 : i32
    %22 = arith.index_cast %21 : i32 to index
    %23 = memref.load %arg3[%22] : memref<36xf32, #tpu.memory_space<smem>>
    %c4_i32 = arith.constant 4 : i32
    %24 = arith.addi %11, %c4_i32 : i32
    %25 = arith.index_cast %24 : i32 to index
    %26 = memref.load %arg3[%25] : memref<36xf32, #tpu.memory_space<smem>>
    %c5_i32 = arith.constant 5 : i32
    %27 = arith.addi %11, %c5_i32 : i32
    %28 = arith.index_cast %27 : i32 to index
    %29 = memref.load %arg3[%28] : memref<36xf32, #tpu.memory_space<smem>>
    %c6_i32 = arith.constant 6 : i32
    %30 = arith.addi %11, %c6_i32 : i32
    %31 = arith.index_cast %30 : i32 to index
    %32 = memref.load %arg3[%31] : memref<36xf32, #tpu.memory_space<smem>>
    %c7_i32 = arith.constant 7 : i32
    %33 = arith.addi %11, %c7_i32 : i32
    %34 = arith.index_cast %33 : i32 to index
    %35 = memref.load %arg3[%34] : memref<36xf32, #tpu.memory_space<smem>>
    %c8_i32 = arith.constant 8 : i32
    %36 = arith.addi %11, %c8_i32 : i32
    %37 = arith.index_cast %36 : i32 to index
    %38 = memref.load %arg3[%37] : memref<36xf32, #tpu.memory_space<smem>>
    %39 = vector.broadcast %14 : f32 to vector<16x16xf32>
    %40 = arith.mulf %7, %39 : vector<16x16xf32>
    %41 = vector.broadcast %17 : f32 to vector<16x16xf32>
    %42 = arith.mulf %5, %41 : vector<16x16xf32>
    %43 = arith.addf %40, %42 : vector<16x16xf32>
    %44 = vector.broadcast %20 : f32 to vector<16x16xf32>
    %45 = arith.mulf %9, %44 : vector<16x16xf32>
    %46 = arith.addf %43, %45 : vector<16x16xf32>
    %47 = vector.broadcast %23 : f32 to vector<16x16xf32>
    %48 = arith.mulf %7, %47 : vector<16x16xf32>
    %49 = vector.broadcast %26 : f32 to vector<16x16xf32>
    %50 = arith.mulf %5, %49 : vector<16x16xf32>
    %51 = arith.addf %48, %50 : vector<16x16xf32>
    %52 = vector.broadcast %29 : f32 to vector<16x16xf32>
    %53 = arith.mulf %9, %52 : vector<16x16xf32>
    %54 = arith.addf %51, %53 : vector<16x16xf32>
    %55 = vector.broadcast %32 : f32 to vector<16x16xf32>
    %56 = arith.mulf %7, %55 : vector<16x16xf32>
    %57 = vector.broadcast %35 : f32 to vector<16x16xf32>
    %58 = arith.mulf %5, %57 : vector<16x16xf32>
    %59 = arith.addf %56, %58 : vector<16x16xf32>
    %60 = vector.broadcast %38 : f32 to vector<16x16xf32>
    %61 = arith.mulf %9, %60 : vector<16x16xf32>
    %62 = arith.addf %59, %61 : vector<16x16xf32>
    %63 = vector.extract_strided_slice %46 {offsets = [0, 0], sizes = [15, 16], strides = [1, 1]} : vector<16x16xf32> to vector<15x16xf32>
    %64 = tpu.concatenate %2, %63 in 0 : vector<1x16xf32>, vector<15x16xf32> -> vector<16x16xf32>
    %65 = arith.addf %54, %64 : vector<16x16xf32>
    %66 = vector.extract_strided_slice %62 {offsets = [1, 0], sizes = [15, 16], strides = [1, 1]} : vector<16x16xf32> to vector<15x16xf32>
    %67 = tpu.concatenate %66, %2 in 0 : vector<15x16xf32>, vector<1x16xf32> -> vector<16x16xf32>
    %68 = arith.addf %65, %67 : vector<16x16xf32>
    %69 = arith.addi %0, %c0_i32 : i32
    %70 = arith.index_cast %69 : i32 to index
    %71 = memref.load %arg4[%70] : memref<4xf32, #tpu.memory_space<smem>>
    %72 = vector.broadcast %71 : f32 to vector<16x16xf32>
    %73 = arith.addf %68, %72 : vector<16x16xf32>
    %cst_5 = arith.constant 0.000000e+00 : f32
    %74 = vector.broadcast %cst_5 : f32 to vector<16x16xf32>
    %75 = arith.maximumf %73, %74 : vector<16x16xf32>
    %c0_6 = arith.constant 0 : index
    %76 = arith.index_cast %c0_i32 : i32 to index
    %c0_7 = arith.constant 0 : index
    %c0_8 = arith.constant 0 : index
    %77 = vector.load %arg5[%c0_6, %76, %c0_7, %c0_8] : memref<1x1x16x16xf32, #tpu.memory_space<vmem>>, vector<1x1x16x16xf32>
    %78 = vector.shape_cast %77 : vector<1x1x16x16xf32> to vector<16x16xf32>
    %79 = vector.shape_cast %75 : vector<16x16xf32> to vector<1x1x16x16xf32>
    tpu.vector_store %arg5[%c0_6, %76, %c0_7, %c0_8], %79 {strides = array<i32>} : memref<1x1x16x16xf32, #tpu.memory_space<vmem>>, vector<1x1x16x16xf32>,
    %c1_i32_9 = arith.constant 1 : i32
    return
  }
  func.func @transform_0(%arg0: i32, %arg1: i32) -> (i32, i32, i32, i32) {
    %c0_i32 = arith.constant 0 : i32
    %c0_i32_0 = arith.constant 0 : i32
    %c0_i32_1 = arith.constant 0 : i32
    return %arg0, %arg1, %c0_i32, %c0_i32_0 : i32, i32, i32, i32
  }
  func.func @transform_1(%arg0: i32, %arg1: i32) -> i32 {
    %c0_i32 = arith.constant 0 : i32
    %c0_i32_0 = arith.constant 0 : i32
    return %c0_i32 : i32
  }
  func.func @transform_2(%arg0: i32, %arg1: i32) -> i32 {
    %c0_i32 = arith.constant 0 : i32
    %c0_i32_0 = arith.constant 0 : i32
    return %c0_i32 : i32
  }
  func.func @transform_3(%arg0: i32, %arg1: i32) -> (i32, i32, i32, i32) {
    %c0_i32 = arith.constant 0 : i32
    %c0_i32_0 = arith.constant 0 : i32
    %c0_i32_1 = arith.constant 0 : i32
    return %arg0, %arg1, %c0_i32, %c0_i32_0 : i32, i32, i32, i32
  }
}

</mosaic_0001>

<llo_original>
// kernel: tpu_custom_call.1
$region0: #{tpu_custom_call.1}
  #allocation0 [shape = 'u32[]', space=smem, size = 0x4, offset = 0x4, fixed_abs, tag = 'smem constant byte address 0x4 - core index']
  #allocation1 [shape = 'u32[2048,128]{1,0:T(1,128)}', space=vmem, size = 0x100000, scoped, tag = 'internal scratch']
  %s0 = inlined_call_operand.hbm [shape: f32[2,4,16,16], index: 0, kind: input, shape index: {}]
  %s1 = inlined_call_operand.vmem [shape: f32[36], index: 1, kind: input, shape index: {}]
  %s2 = inlined_call_operand.vmem [shape: f32[4], index: 2, kind: input, shape index: {}]
  %s3 = inlined_call_operand.hbm [shape: f32[2,4,16,16], index: 3, kind: output, shape index: {}]
  %s4 = sld [smem:[#allocation0]]
  $region57: #{tpu_custom_call.1} parent=0
    _
  %s6 = ssub.s32 1, %s4
  %s7 = scalar_select 0, %s6, %s4
  $region1: #{tpu_custom_call.1} parent=0
    #allocation2 [shape = 'u8[16384]{0}', space=vmem, size = 0x4000, scoped, tag = 'input window, operand 0']
    #allocation3 [shape = 's32[2]{0}', space=sflag, size = 0x8, scoped, tag = 'scoped memory for tpu_custom_call.1']
    #allocation4 [shape = 's32[2]{0}', space=sflag, size = 0x8, scoped, tag = 'scoped memory for tpu_custom_call.1']
    #allocation5 [shape = 's32[2]{0}', space=sflag, size = 0x8, scoped, tag = 'scoped memory for tpu_custom_call.1']
    #allocation6 [shape = 'u8[512]{0}', space=smem, size = 0x200, scoped, tag = 'input window, operand 1, single buffered']
    #allocation7 [shape = 'u8[512]{0}', space=smem, size = 0x200, scoped, tag = 'input window, operand 2, single buffered']
    #allocation8 [shape = 's32[1]{0}', space=sflag, size = 0x4, scoped, tag = 'scoped memory for tpu_custom_call.1']
    #allocation9 [shape = 'u8[16384]{0}', space=vmem, size = 0x4000, scoped, tag = 'output window, operand 0']
    %8 = vsyncpa [#allocation3], 0
    %s9 = scalar_lea.sflag [#allocation3], 1
    %10 = vsyncpa %s9, 0
    %11 = vsyncpa [#allocation5], 0
    %12 = vsyncpa [#allocation8], 0
    %13 = vsyncpa [#allocation4], 0
    %s14 = scalar_lea.sflag [#allocation4], 1
    %15 = vsyncpa %s14, 0
    loop: start=0, step=1, limit=10
    $region2: #{tpu_custom_call.1} parent=1 // loop_pre_header
      _
    $region3: #{tpu_custom_call.1} parent=1 // loop_header
      %s17 = sphi 0, %s21
      %p18 = scmp.ge.s32.totalorder %s17, 10
      %s24 = sphi 0, %s36
      %s25 = sphi 0, %s32
      %s26 = sphi 0, %s24
      %s27 = sphi 0, %s25
      %s28 = sphi 0, %s26
      %s29 = sphi 0, %s27
      %s41 = sphi 0, %s43
      %s44 = sphi 0, %s41
      %s45 = sphi 0, %s44
      %s61 = sphi 0, %s45
      %s65 = sphi 0, %s65
      %s67 = sphi 0, %s65
      %s68 = sphi 0, %s67
      %s82 = sphi 0, %s68
      %s86 = sphi 0, %s86
      %s88 = sphi 0, %s86
      %s89 = sphi 0, %s88
      %s103 = sphi 0, %s89
      %s111 = sphi 0, %s113
      %s114 = sphi 0, %s111
      %s115 = sphi 0, %s114
      %s131 = sphi 0, %s115
    $region4: #{tpu_custom_call.1} parent=1 // loop_header_branch
      %20 = sbr.rel (%p18) target = $region8
    $region5: #{tpu_custom_call.1} parent=1 // loop_body
      %s22 = ssub.s32 %s17, 1
      %s23 = ssub.s32 %s17, 2
      %s30 = sadd.s32 1, %s25
      %p31 = scmp.ge.s32.totalorder %s30, 4
      %s32 = scalar_select %p31, 0, %s30
      %s33 = sadd.s32 1, %s24
      %s34 = scalar_select %p31, %s33, %s24
      %p35 = scmp.ge.s32.totalorder %s34, 2
      %s36 = scalar_select %p35, 0, %s34
      %s37 = ssub.s32 %s24, %s36
      %s38 = ssub.s32 %s25, %s32
      %s39 = sor.u32 %s37, %s38
      %p40 = scmp.eq.s32.totalorder %s39, 0
      %s42 = sadd.s32 %s41, 1
      %s43 = scalar_select %p40, %s41, %s42
      %p46 = pneg %p40
      %p47 = scmp.eq.s32.totalorder %s17, 7
      %p48 = por %p46, %p47
      %p49 = scmp.ne.s32.totalorder %s41, %s44
      %p50 = scmp.eq.s32.totalorder %s17, 0
      %p51 = por %p49, %p50
      %p52 = scmp.ne.s32.totalorder %s41, %s44
      %p53 = scmp.eq.s32.totalorder %s22, 7
      %p54 = por %p52, %p53
      %p55 = scmp.ne.s32.totalorder %s44, %s45
      %p56 = scmp.eq.s32.totalorder %s22, 0
      %p57 = por %p55, %p56
      %p58 = scmp.ne.s32.totalorder %s44, %s45
      %p59 = scmp.eq.s32.totalorder %s23, 7
      %p60 = por %p58, %p59
      %p62 = scmp.ne.s32.totalorder %s45, %s61
      %p63 = scmp.eq.s32.totalorder %s23, 0
      %p64 = por %p62, %p63
      %s66 = sadd.s32 %s65, 1
      %p69 = scmp.eq.s32.totalorder %s17, 7
      %p70 = scmp.ne.s32.totalorder %s65, %s67
      %p71 = scmp.eq.s32.totalorder %s17, 0
      %p72 = por %p70, %p71
      %p73 = scmp.ne.s32.totalorder %s65, %s67
      %p74 = scmp.eq.s32.totalorder %s22, 7
      %p75 = por %p73, %p74
      %p76 = scmp.ne.s32.totalorder %s67, %s68
      %p77 = scmp.eq.s32.totalorder %s22, 0
      %p78 = por %p76, %p77
      %p79 = scmp.ne.s32.totalorder %s67, %s68
      %p80 = scmp.eq.s32.totalorder %s23, 7
      %p81 = por %p79, %p80
      %p83 = scmp.ne.s32.totalorder %s68, %s82
      %p84 = scmp.eq.s32.totalorder %s23, 0
      %p85 = por %p83, %p84
      %s87 = sadd.s32 %s86, 1
      %p90 = scmp.eq.s32.totalorder %s17, 7
      %p91 = scmp.ne.s32.totalorder %s86, %s88
      %p92 = scmp.eq.s32.totalorder %s17, 0
      %p93 = por %p91, %p92
      %p94 = scmp.ne.s32.totalorder %s86, %s88
      %p95 = scmp.eq.s32.totalorder %s22, 7
      %p96 = por %p94, %p95
      %p97 = scmp.ne.s32.totalorder %s88, %s89
      %p98 = scmp.eq.s32.totalorder %s22, 0
      %p99 = por %p97, %p98
      %p100 = scmp.ne.s32.totalorder %s88, %s89
      %p101 = scmp.eq.s32.totalorder %s23, 7
      %p102 = por %p100, %p101
      %p104 = scmp.ne.s32.totalorder %s89, %s103
      %p105 = scmp.eq.s32.totalorder %s23, 0
      %p106 = por %p104, %p105
      %s107 = ssub.s32 %s24, %s36
      %s108 = ssub.s32 %s25, %s32
      %s109 = sor.u32 %s107, %s108
      %p110 = scmp.eq.s32.totalorder %s109, 0
      %s112 = sadd.s32 %s111, 1
      %s113 = scalar_select %p110, %s111, %s112
      %p116 = pneg %p110
      %p117 = scmp.eq.s32.totalorder %s17, 7
      %p118 = por %p116, %p117
      %p119 = scmp.ne.s32.totalorder %s111, %s114
      %p120 = scmp.eq.s32.totalorder %s17, 0
      %p121 = por %p119, %p120
      %p122 = scmp.ne.s32.totalorder %s111, %s114
      %p123 = scmp.eq.s32.totalorder %s22, 7
      %p124 = por %p122, %p123
      %p125 = scmp.ne.s32.totalorder %s114, %s115
      %p126 = scmp.eq.s32.totalorder %s22, 0
      %p127 = por %p125, %p126
      %p128 = scmp.ne.s32.totalorder %s114, %s115
      %p129 = scmp.eq.s32.totalorder %s23, 7
      %p130 = por %p128, %p129
      %p132 = scmp.ne.s32.totalorder %s115, %s131
      %p133 = scmp.eq.s32.totalorder %s23, 0
      %p134 = por %p132, %p133
      %p135 = scmp.le.s32.totalorder 1, %s17
      %p136 = scmp.lt.s32.totalorder %s17, 9
      %p137 = pnand %p135, %p136
      %p138 = pneg %p137
      // Predicated region
      $region9: #{tpu_custom_call.1} parent=5 // pred_check
        _
      $region10: #{tpu_custom_call.1} parent=5 // pred_check_branch
        %140 = sbr.rel (%p137) target = $region12
      $region11: #{tpu_custom_call.1} parent=5 // pred_region
        %s141 = ssub.s32 %s17, 1
        // Predicated region
        $region13: #{tpu_custom_call.1} parent=11 // pred_check
          %p142 = pneg %p78
        $region14: #{tpu_custom_call.1} parent=11 // pred_check_branch
          %144 = sbr.rel (%p142) target = $region16
        $region15: #{tpu_custom_call.1} parent=11 // pred_region
          %s146 = ssub.s32 16, 16
          %147 = vsyncadd [#allocation5], %s146
          %s149 = sshll.u32 %s1, 4
          %s150 = int_to_ptr.vmem [resolvable:$true] %s149
          %152 = dma.vmem_to_smem %s150, 16, [#allocation6], [#allocation5]
        $region16: #{tpu_custom_call.1} parent=11 // pred_fallthru
          _
        // Predicated region
        $region17: #{tpu_custom_call.1} parent=11 // pred_check
          %p153 = pneg %p99
        $region18: #{tpu_custom_call.1} parent=11 // pred_check_branch
          %155 = sbr.rel (%p153) target = $region20
        $region19: #{tpu_custom_call.1} parent=11 // pred_region
          %s157 = ssub.s32 16, 16
          %158 = vsyncadd [#allocation8], %s157
          %s160 = sshll.u32 %s2, 4
          %s161 = int_to_ptr.vmem [resolvable:$true] %s160
          %163 = dma.vmem_to_smem %s161, 16, [#allocation7], [#allocation8]
        $region20: #{tpu_custom_call.1} parent=11 // pred_fallthru
          _
      $region12: #{tpu_custom_call.1} parent=5 // pred_fallthru
        _
      %p164 = scmp.lt.s32.totalorder %s17, 8
      // Predicated region
      $region21: #{tpu_custom_call.1} parent=5 // pred_check
        %p165 = pneg %p164
      $region22: #{tpu_custom_call.1} parent=5 // pred_check_branch
        %167 = sbr.rel (%p165) target = $region24
      $region23: #{tpu_custom_call.1} parent=5 // pred_region
        // Predicated region
        $region25: #{tpu_custom_call.1} parent=23 // pred_check
          %p168 = pneg %p51
        $region26: #{tpu_custom_call.1} parent=23 // pred_check_branch
          %170 = sbr.rel (%p168) target = $region28
        $region27: #{tpu_custom_call.1} parent=23 // pred_region
          %s171 = sand.u32 %s41, 1
          %s172 = scalar_lea.sflag [#allocation3], %s171
          %s173 = sand.u32 %s41, 1
          %s174 = smul.addr %s173, 16
          %s175 = scalar_lea.vmem [#allocation2], %s174
          %s177 = ssub.s32 256, 256
          %178 = vsyncadd %s172, %s177
          %s179 = smul.addr %s25, 2
          %s180 = smul.addr %s24, 8
          %s181 = sadd.s32 %s179, %s180
          %s182 = smul.addr %s181, 128
          %s183 = scalar_lea.hbm %s0, %s182
          %s184 = sshll.u32 %s175, 4
          %s185 = int_to_ptr.vmem [resolvable:$true] %s184
          %190 = dma.hbm_to_vmem [thread:$0]  %s183, 256, %s185, %s172, 128, 128, 8
        $region28: #{tpu_custom_call.1} parent=23 // pred_fallthru
          _
      $region24: #{tpu_custom_call.1} parent=5 // pred_fallthru
        _
      %p191 = scmp.le.s32.totalorder 1, %s17
      %p192 = scmp.lt.s32.totalorder %s17, 9
      %p193 = pnand %p191, %p192
      %p194 = pneg %p193
      // Predicated region
      $region29: #{tpu_custom_call.1} parent=5 // pred_check
        _
      $region30: #{tpu_custom_call.1} parent=5 // pred_check_branch
        %196 = sbr.rel (%p193) target = $region32
      $region31: #{tpu_custom_call.1} parent=5 // pred_region
        %s197 = ssub.s32 %s17, 1
        %s198 = sand.u32 %s44, 1
        %s199 = scalar_lea.sflag [#allocation3], %s198
        %s200 = sand.u32 %s44, 1
        %s201 = smul.addr %s200, 16
        %s202 = scalar_lea.vmem [#allocation2], %s201
        // Predicated region
        $region33: #{tpu_custom_call.1} parent=31 // pred_check
          %p203 = pneg %p57
        $region34: #{tpu_custom_call.1} parent=31 // pred_check_branch
          %205 = sbr.rel (%p203) target = $region36
        $region35: #{tpu_custom_call.1} parent=31 // pred_region
          %206 = dma.done %s199, 256
        $region36: #{tpu_custom_call.1} parent=31 // pred_fallthru
          _
        // Predicated region
        $region37: #{tpu_custom_call.1} parent=31 // pred_check
          %p207 = pneg %p78
        $region38: #{tpu_custom_call.1} parent=31 // pred_check_branch
          %209 = sbr.rel (%p207) target = $region40
        $region39: #{tpu_custom_call.1} parent=31 // pred_region
          %210 = dma.done [#allocation5], 16
        $region40: #{tpu_custom_call.1} parent=31 // pred_fallthru
          _
        // Predicated region
        $region41: #{tpu_custom_call.1} parent=31 // pred_check
          %p211 = pneg %p99
        $region42: #{tpu_custom_call.1} parent=31 // pred_check_branch
          %213 = sbr.rel (%p211) target = $region44
        $region43: #{tpu_custom_call.1} parent=31 // pred_region
          %214 = dma.done [#allocation8], 16
        $region44: #{tpu_custom_call.1} parent=31 // pred_fallthru
          _
        %215 = sfence
        %s216 = sand.u32 %s44, 1
        %s217 = scalar_lea.sflag [#allocation3], %s216
        %s218 = sand.u32 %s44, 1
        %s219 = smul.addr %s218, 16
        %s220 = scalar_lea.vmem [#allocation2], %s219
        %p221 = pneg %p57
        %p222 = pneg %p54
        %p223 = pneg %p78
        %p224 = pneg %p75
        %p225 = pneg %p99
        %p226 = pneg %p96
        %p227 = pneg %p127
        %p228 = pneg %p124
        %s229 = sand.u32 %s114, 1
        %s230 = scalar_lea.sflag [#allocation4], %s229
        %s231 = sand.u32 %s114, 1
        %s232 = smul.addr %s231, 16
        %s233 = scalar_lea.vmem [#allocation9], %s232
        %v234 = vld [vmem:[%s202] sm:$0xff]
        %v235 = vld [vmem:[%s202 + $0x8] sm:$0xff]
        %238 = vrot.lane.b32.xlu0 %v234, 1
        %v239 = vpop.permute.xlu0 %238
        %240 = vrot.lane.b32.xlu0 %v235, 1
        %v241 = vpop.permute.xlu0 %240
        %vm244 = vcmask 7168
        %v245 = vsel %vm244, 0.0, %v239
        %v246 = vsel %vm244, 0.0, %v241
        %247 = vrot.lane.b32.xlu0 %v234, 127
        %v248 = vpop.permute.xlu0 %247
        %249 = vrot.lane.b32.xlu0 %v235, 127
        %v250 = vpop.permute.xlu0 %249
        %vm253 = vcmask 121856
        %v254 = vsel %vm253, %v248, 0.0
        %v255 = vsel %vm253, %v250, 0.0
        %s256 = smul.u32 %s27, 9
        %s257 = sld [smem:[#allocation6 + %s256]]
        %s258 = sadd.s32 %s256, 1
        %s259 = sld [smem:[#allocation6 + %s258]]
        %s260 = sadd.s32 %s256, 2
        %s261 = sld [smem:[#allocation6 + %s260]]
        %s262 = sadd.s32 %s256, 3
        %s263 = sld [smem:[#allocation6 + %s262]]
        %s264 = sadd.s32 %s256, 4
        %s265 = sld [smem:[#allocation6 + %s264]]
        %s266 = sadd.s32 %s256, 5
        %s267 = sld [smem:[#allocation6 + %s266]]
        %s268 = sadd.s32 %s256, 6
        %s269 = sld [smem:[#allocation6 + %s268]]
        %s270 = sadd.s32 %s256, 7
        %s271 = sld [smem:[#allocation6 + %s270]]
        %s272 = sadd.s32 %s256, 8
        %s273 = sld [smem:[#allocation6 + %s272]]
        %v274 = vstv %s257
        %v275 = vmul.f32 %v245, %v274
        %v276 = vmul.f32 %v246, %v274
        %v277 = vstv %s259
        %v278 = vmul.f32 %v234, %v277
        %v279 = vmul.f32 %v235, %v277
        %v280 = vadd.f32 %v275, %v278
        %v281 = vadd.f32 %v276, %v279
        %v282 = vstv %s261
        %v283 = vmul.f32 %v254, %v282
        %v284 = vmul.f32 %v255, %v282
        %v285 = vadd.f32 %v280, %v283
        %v286 = vadd.f32 %v281, %v284
        %v287 = vstv %s263
        %v288 = vmul.f32 %v245, %v287
        %v289 = vmul.f32 %v246, %v287
        %v290 = vstv %s265
        %v291 = vmul.f32 %v234, %v290
        %v292 = vmul.f32 %v235, %v290
        %v293 = vadd.f32 %v288, %v291
        %v294 = vadd.f32 %v289, %v292
        %v295 = vstv %s267
        %v296 = vmul.f32 %v254, %v295
        %v297 = vmul.f32 %v255, %v295
        %v298 = vadd.f32 %v293, %v296
        %v299 = vadd.f32 %v294, %v297
        %v300 = vstv %s269
        %v301 = vmul.f32 %v245, %v300
        %v302 = vmul.f32 %v246, %v300
        %v303 = vstv %s271
        %v304 = vmul.f32 %v234, %v303
        %v305 = vmul.f32 %v235, %v303
        %v306 = vadd.f32 %v301, %v304
        %v307 = vadd.f32 %v302, %v305
        %v308 = vstv %s273
        %v309 = vmul.f32 %v254, %v308
        %v310 = vmul.f32 %v255, %v308
        %v311 = vadd.f32 %v306, %v309
        %v312 = vadd.f32 %v307, %v310
        %vm315 = vcmask 1040384
        %v316 = vrot.slane %v285, 7
        %v317 = vrot.slane %v286, 7
        %v318 = vsel %vm315, %v316, %v317
        %v321 = vsel %vm315, 0.0, %v316
        %v322 = vadd.f32 %v298, %v321
        %v323 = vadd.f32 %v299, %v318
        %vm326 = vcmask 1046528
        %v327 = vrot.slane %v311, 1
        %v328 = vrot.slane %v312, 1
        %v329 = vsel %vm326, %v327, %v328
        %v332 = vsel %vm326, %v328, 0.0
        %v333 = vadd.f32 %v322, %v329
        %v334 = vadd.f32 %v323, %v332
        %s335 = sld [smem:[#allocation7 + %s27]]
        %v336 = vstv %s335
        %v337 = vadd.f32 %v333, %v336
        %v338 = vadd.f32 %v334, %v336
        %v339 = vmax.f32 %v337, 0.0
        %v340 = vmax.f32 %v338, 0.0
        %vm341 = vcmask 130048
        %342 = vst.msk [vmem:[%s233] sm:$0xff] %vm341, %v339
        %343 = vst.msk [vmem:[%s233 + $0x8] sm:$0xff] %vm341, %v340
        %s344 = sand.u32 %s114, 1
        %s345 = scalar_lea.sflag [#allocation4], %s344
        %s346 = sand.u32 %s114, 1
        %s347 = smul.addr %s346, 16
        %s348 = scalar_lea.vmem [#allocation9], %s347
        // Predicated region
        $region45: #{tpu_custom_call.1} parent=31 // pred_check
          %p349 = pneg %p124
        $region46: #{tpu_custom_call.1} parent=31 // pred_check_branch
          %351 = sbr.rel (%p349) target = $region48
        $region47: #{tpu_custom_call.1} parent=31 // pred_region
          %s353 = ssub.s32 256, 256
          %354 = vsyncadd %s345, %s353
          %s355 = smul.addr %s27, 2
          %s356 = smul.addr %s26, 8
          %s357 = sadd.s32 %s355, %s356
          %s358 = smul.addr %s357, 128
          %s359 = scalar_lea.hbm %s3, %s358
          %s360 = sshll.u32 %s348, 4
          %s361 = int_to_ptr.vmem [resolvable:$true] %s360
          %366 = dma.vmem_to_hbm [thread:$0]  %s361, 256, %s359, %s345, 128, 128, 8
        $region48: #{tpu_custom_call.1} parent=31 // pred_fallthru
          _
      $region32: #{tpu_custom_call.1} parent=5 // pred_fallthru
        _
      %p367 = scmp.le.s32.totalorder 2, %s17
      // Predicated region
      $region49: #{tpu_custom_call.1} parent=5 // pred_check
        %p368 = pneg %p367
      $region50: #{tpu_custom_call.1} parent=5 // pred_check_branch
        %370 = sbr.rel (%p368) target = $region52
      $region51: #{tpu_custom_call.1} parent=5 // pred_region
        %s371 = ssub.s32 %s17, 2
        // Predicated region
        $region53: #{tpu_custom_call.1} parent=51 // pred_check
          %p372 = pneg %p130
        $region54: #{tpu_custom_call.1} parent=51 // pred_check_branch
          %374 = sbr.rel (%p372) target = $region56
        $region55: #{tpu_custom_call.1} parent=51 // pred_region
          %s375 = sand.u32 %s115, 1
          %s376 = scalar_lea.sflag [#allocation4], %s375
          %s377 = sand.u32 %s115, 1
          %s378 = smul.addr %s377, 16
          %s379 = scalar_lea.vmem [#allocation9], %s378
          %380 = dma.done %s376, 256
        $region56: #{tpu_custom_call.1} parent=51 // pred_fallthru
          _
      $region52: #{tpu_custom_call.1} parent=5 // pred_fallthru
        _
    $region6: #{tpu_custom_call.1} parent=1 // loop_footer
      %s21 = sadd.s32 1, %s17
    $region7: #{tpu_custom_call.1} parent=1 // loop_footer_branch
      %16 = sbr.rel target = $region3
    $region8: #{tpu_custom_call.1} parent=1 // loop_exit
      _
    %381 = vsyncpa [#allocation3], 1
    %s382 = scalar_lea.sflag [#allocation3], 1
    %383 = vsyncpa %s382, 1
    %384 = vsyncpa [#allocation4], 1
    %s385 = scalar_lea.sflag [#allocation4], 1
    %386 = vsyncpa %s385, 1
    %387 = vsyncpa [#allocation5], 1
    %s388 = scalar_lea.sflag [#allocation5], 1
    %389 = vsyncpa %s388, 1
    %390 = vsyncpa [#allocation8], 1

</llo_original>
